<compile_context>
chip_gen: v7x
topology: tpu7x:2x2x1
jax: 0.10.0
libtpu: 0.0.40
codegen_flags: <defaults>
</compile_context>

<pallas_src>
import functools

import jax
import jax.numpy as jnp
from jax.experimental import pallas as pl
from jax.experimental.pallas import tpu as pltpu

_LANE = 128
_BF16_SUBLANE = 16


def _round_up(v, m):
    return (v + m - 1) // m * m


def _softplus_f32(z):
    # Numerically stable softplus (f32 epilogue).
    return jnp.maximum(z, 0.0) + jnp.log1p(jnp.exp(-jnp.abs(z)))


# ----------------------------------------------------------------------------- kernels

def _fused_kernel(x_ref, w1_ref, b1_ref, w2_ref, b2_ref, w3_ref, b3_ref, o_ref):
    """All heads fit in one column tile: fully fused, no intermediate VMEM round trip."""
    h1 = jnp.dot(x_ref[...], w1_ref[...], preferred_element_type=jnp.float32) + b1_ref[...]
    h1 = jnp.maximum(h1, 0.0).astype(jnp.bfloat16)
    h2 = jnp.dot(h1, w2_ref[...], preferred_element_type=jnp.float32) + b2_ref[...]
    h2 = jnp.maximum(h2, 0.0).astype(jnp.bfloat16)
    z = jnp.dot(h2, w3_ref[...], preferred_element_type=jnp.float32) + b3_ref[...]
    o_ref[...] = _softplus_f32(z).astype(o_ref.dtype)


def _ftiled_kernel(x_ref, w1_ref, b1_ref, w2_ref, b2_ref, w3_ref, b3_ref, o_ref, h2_ref):
    """Column-tiled heads: h2 is computed once per row tile (F axis is the inner grid loop)."""
    @pl.when(pl.program_id(1) == 0)
    def _():
        h1 = jnp.dot(x_ref[...], w1_ref[...], preferred_element_type=jnp.float32) + b1_ref[...]
        h1 = jnp.maximum(h1, 0.0).astype(jnp.bfloat16)
        h2 = jnp.dot(h1, w2_ref[...], preferred_element_type=jnp.float32) + b2_ref[...]
        h2_ref[...] = jnp.maximum(h2, 0.0).astype(h2_ref.dtype)

    z = jnp.dot(h2_ref[...], w3_ref[...], preferred_element_type=jnp.float32) + b3_ref[...]
    o_ref[...] = _softplus_f32(z).astype(o_ref.dtype)


# ----------------------------------------------------------------------------- tiling / budget

def _vmem_budget_bytes():
    try:
        cap = int(getattr(pltpu.get_tpu_info(), "vmem_capacity_bytes", 64 << 20))
    except Exception:
        cap = 64 << 20  # conservative (v7x-sized) fallback
    return int(cap * 3 // 4)  # leave headroom for compiler-internal scratch


def _choose_tiles(N, E_pad, H_pad, F_pad, single_buffer):
    """Pick (TM, TF) so the VMEM footprint fits the generation's budget."""
    budget = _vmem_budget_bytes()
    bf16_b, f32_b = 2, 4
    wbuf = 1 if single_buffer else 2

    # Grid-invariant layer-1/2 weights and biases (resident in VMEM).
    fixed = wbuf * ((E_pad * H_pad + H_pad * H_pad) * bf16_b + 2 * H_pad * f32_b)
    avail = max(budget - fixed, 0)

    def w3_bytes(tf, nbuf):
        return nbuf * (H_pad * tf * bf16_b + tf * f32_b)

    # Column tile over the concatenated heads: split only if w3 would eat too much VMEM.
    TF = F_pad
    if avail == 0 or w3_bytes(TF, wbuf) > avail // 2:
        per_col = 2 * (H_pad * bf16_b + f32_b)  # column tiles get double-buffered
        TF = max(_LANE, min(F_pad, (avail // 2) // per_col // _LANE * _LANE))
    n_f = -(-F_pad // TF)
    avail2 = max(avail - w3_bytes(TF, wbuf if n_f == 1 else 2), 0)

    # Per-row VMEM: x tile (bf16, dbl-buffered) + out tile (f32, dbl-buffered) + h2 scratch (bf16).
    per_row = 2 * E_pad * bf16_b + 2 * TF * f32_b + H_pad * bf16_b
    tm_fit = max(avail2 // per_row, _BF16_SUBLANE)
    TM = int(min(1024, (tm_fit // _BF16_SUBLANE) * _BF16_SUBLANE))
    TM = max(_BF16_SUBLANE,
             min(TM,
                 _round_up(-(-N // 2), _BF16_SUBLANE),   # aim for >= 2 row tiles when N allows
                 _round_up(N, _BF16_SUBLANE)))
    return TM, TF, n_f, budget


# ----------------------------------------------------------------------------- wrapper

def prepare_params(params):
    """One-time padding / bf16 casting / head concatenation (hoisted out of the per-call path)."""
    w1, b1 = params["w1"], params["b1"]          # (E, H), (1, H) with H = 4E
    w2, b2 = params["w2"], params["b2"]          # (H, H), (1, H)
    head_w, head_b = params["head_w"], params["head_b"]

    E, H = w1.shape
    F_list = tuple(int(w.shape[1]) for w in head_w)
    F_total = sum(F_list)

    E_pad = _round_up(E, _BF16_SUBLANE)          # contraction dim NOT padded to 128
    H_pad = _round_up(H, _LANE)
    F_pad = _round_up(F_total, _LANE)

    bf16, f32 = jnp.bfloat16, jnp.float32
    w3 = jnp.concatenate(head_w, axis=1)
    b3 = jnp.concatenate(head_b, axis=1)
    return {
        "w1": jnp.pad(w1, ((0, E_pad - E), (0, H_pad - H))).astype(bf16),
        "b1": jnp.pad(b1, ((0, 0), (0, H_pad - H))).astype(f32),
        "w2": jnp.pad(w2, ((0, H_pad - H), (0, H_pad - H))).astype(bf16),
        "b2": jnp.pad(b2, ((0, 0), (0, H_pad - H))).astype(f32),
        "w3": jnp.pad(w3, ((0, H_pad - H), (0, F_pad - F_total))).astype(bf16),
        "b3": jnp.pad(b3, ((0, 0), (0, F_pad - F_total))).astype(f32),
        "E": int(E),
        "F_list": F_list,
    }


@functools.partial(jax.jit, static_argnames=("single_buffer", "out_dtype"))
def _forward_padded(x, w1, b1, w2, b2, w3, b3, *, single_buffer, out_dtype=jnp.float32):
    N, E = x.shape
    E_pad, H_pad = w1.shape
    F_pad = w3.shape[1]

    TM, TF, n_f, vmem_budget = _choose_tiles(N, E_pad, H_pad, F_pad, single_buffer)
    N_pad = _round_up(N, TM)
    n_rows = N_pad // TM

    # Only x is padded/cast per call (weights are prepared once in prepare_params).
    x_p = jnp.pad(x, ((0, N_pad - N), (0, E_pad - E))).astype(jnp.bfloat16)

    cost = pl.CostEstimate(
        flops=2 * N_pad * (E_pad * H_pad + H_pad * H_pad + H_pad * F_pad),
        transcendentals=2 * N_pad * F_pad,  # exp + log1p in softplus
        bytes_accessed=(x_p.size * 2
                        + (w1.size + w2.size + w3.size) * 2
                        + (b1.size + b2.size + b3.size) * 4
                        + N_pad * F_pad * 4),
    )
    cparams = pltpu.CompilerParams(
        dimension_semantics=("parallel",) if n_f == 1 else ("parallel", "arbitrary"),
        vmem_limit_bytes=int(vmem_budget),
    )

    if n_f == 1:
        row = lambda shape: pl.BlockSpec(shape, lambda i: (i, 0))
        if single_buffer:
            res = lambda shape: pl.BlockSpec(shape, lambda i: (0, 0),
                                             pipeline_mode=pl.Buffered(1))
        else:
            res = lambda shape: pl.BlockSpec(shape, lambda i: (0, 0))
        out_full = pl.pallas_call(
            _fused_kernel,
            out_shape=jax.ShapeDtypeStruct((N_pad, F_pad), out_dtype),
            grid=(n_rows,),
            in_specs=[row((TM, E_pad)),
                      res((E_pad, H_pad)), res((1, H_pad)),
                      res((H_pad, H_pad)), res((1, H_pad)),
                      res((H_pad, F_pad)), res((1, F_pad))],
            out_specs=row((TM, F_pad)),
            compiler_params=cparams,
            cost_estimate=cost,
        )(x_p, w1, b1, w2, b2, w3, b3)
    else:
        if single_buffer:
            res = lambda shape: pl.BlockSpec(shape, lambda i, j: (0, 0),
                                             pipeline_mode=pl.Buffered(1))
        else:
            res = lambda shape: pl.BlockSpec(shape, lambda i, j: (0, 0))
        out_full = pl.pallas_call(
            _ftiled_kernel,
            out_shape=jax.ShapeDtypeStruct((N_pad, F_pad), out_dtype),
            grid=(n_rows, n_f),
            in_specs=[pl.BlockSpec((TM, E_pad), lambda i, j: (i, 0)),
                      res((E_pad, H_pad)), res((1, H_pad)),
                      res((H_pad, H_pad)), res((1, H_pad)),
                      pl.BlockSpec((H_pad, TF), lambda i, j: (0, j)),
                      pl.BlockSpec((1, TF), lambda i, j: (0, j))],
            out_specs=pl.BlockSpec((TM, TF), lambda i, j: (i, j)),
            scratch_shapes=[pltpu.VMEM((TM, H_pad), jnp.bfloat16)],
            compiler_params=cparams,
            cost_estimate=cost,
        )(x_p, w1, b1, w2, b2, w3, b3)

    return out_full[:N]


_SINGLE_BUFFER_OK = None  # lazily probed: does this jax build accept pipeline_mode=pl.Buffered(1)?


def _run_forward(x2d, prepared):
    global _SINGLE_BUFFER_OK
    args = (x2d, prepared["w1"], prepared["b1"], prepared["w2"], prepared["b2"],
            prepared["w3"], prepared["b3"])
    if _SINGLE_BUFFER_OK is None:
        try:
            out = _forward_padded(*args, single_buffer=True)
            jax.block_until_ready(out)
            _SINGLE_BUFFER_OK = True
            return out
        except Exception:
            _SINGLE_BUFFER_OK = False  # fall back to default double-buffered weight specs
    return _forward_padded(*args, single_buffer=_SINGLE_BUFFER_OK)


def prediction_head_forward_all(x, prepared):
    """x: (..., E). Returns a tuple of per-genome outputs with shapes (..., n_features[i])."""
    lead = x.shape[:-1]
    x2d = x.reshape(-1, x.shape[-1])
    out_full = _run_forward(x2d, prepared)
    outs, off = [], 0
    for f in prepared["F_list"]:
        outs.append(out_full[:, off:off + f].reshape(*lead, f))
        off += f
    return tuple(outs)


def prediction_head_forward(x, prepared, bit=0):
    """Matches PredictionHead.forward(input, bit): returns the `bit`-th genome head output."""
    return prediction_head_forward_all(x, prepared)[bit]


# ----------------------------------------------------------------------------- params / references

def init_params(key, embed_dim, n_features):
    """Deterministic synthetic parameters matching PredictionHead(__init__) shapes."""
    H = 4 * embed_dim
    keys = jax.random.split(key, 4 + 2 * len(n_features))
    scale = 0.05
    params = {
        "w1": scale * jax.random.normal(keys[0], (embed_dim, H), jnp.float32),
        "b1": scale * jax.random.normal(keys[1], (1, H), jnp.float32),
        "w2": scale * jax.random.normal(keys[2], (H, H), jnp.float32),
        "b2": scale * jax.random.normal(keys[3], (1, H), jnp.float32),
        "head_w": [],
        "head_b": [],
    }
    for i, nf in enumerate(n_features):
        params["head_w"].append(scale * jax.random.normal(keys[4 + 2 * i], (H, nf), jnp.float32))
        params["head_b"].append(scale * jax.random.normal(keys[5 + 2 * i], (1, nf), jnp.float32))
    return params


def _reference_forward_f32(x, params, bit=0):
    h1 = jnp.maximum(jnp.dot(x, params["w1"]) + params["b1"], 0.0)
    h2 = jnp.maximum(jnp.dot(h1, params["w2"]) + params["b2"], 0.0)
    z = jnp.dot(h2, params["head_w"][bit]) + params["head_b"][bit]
    return jax.nn.softplus(z)


def _reference_forward_bf16(x, params, bit=0):
    """Mirrors the kernel's bf16-matmul / f32-epilogue numerics."""
    bf = jnp.bfloat16
    h1 = jnp.dot(x.astype(bf), params["w1"].astype(bf),
                 preferred_element_type=jnp.float32) + params["b1"]
    h1 = jnp.maximum(h1, 0.0).astype(bf)
    h2 = jnp.dot(h1, params["w2"].astype(bf),
                 preferred_element_type=jnp.float32) + params["b2"]
    h2 = jnp.maximum(h2, 0.0).astype(bf)
    z = jnp.dot(h2, params["head_w"][bit].astype(bf),
                preferred_element_type=jnp.float32) + params["head_b"][bit]
    return jax.nn.softplus(z)


if __name__ == "__main__":
    key = jax.random.PRNGKey(0)
    k_x, k_p = jax.random.split(key)

    embed_dim = 32                 # feedforward_dim
    n_features = [16, 8]           # two genomes
    batch, seq = 2, 8

    x = jax.random.normal(k_x, (batch, seq, embed_dim), jnp.float32)
    params = init_params(k_p, embed_dim, n_features)
    prepared = prepare_params(params)           # one-time weight padding / casting / concat

    # One kernel call computes every genome head; per-bit results are column slices.
    outs = prediction_head_forward_all(x, prepared)
    jax.block_until_ready(outs)
    out0 = prediction_head_forward(x, prepared, bit=0)
    out1 = prediction_head_forward(x, prepared, bit=1)
    jax.block_until_ready((out0, out1))

    for bit, out in enumerate((out0, out1)):
        assert out.shape == (batch, seq, n_features[bit])
        ref_bf = _reference_forward_bf16(x, params, bit=bit)
        ref_f32 = _reference_forward_f32(x, params, bit=bit)
        err_bf = float(jnp.max(jnp.abs(out - ref_bf)))
        err_f32 = float(jnp.max(jnp.abs(out - ref_f32)))
        assert jnp.allclose(out, ref_bf, atol=1e-4, rtol=1e-4), f"bit={bit} bf16-ref err {err_bf}"
        assert jnp.allclose(out, ref_f32, atol=3e-2, rtol=3e-2), f"bit={bit} f32-ref err {err_f32}"

    print("KERNEL_OK")
</pallas_src>

<mosaic_0001>
module attributes {stable_mosaic.version = 11 : i64} {
  func.func @_fused_kernel(%arg0: i32, %arg1: memref<16x32xbf16, #tpu.memory_space<vmem>>, %arg2: memref<32x128xbf16, #tpu.memory_space<vmem>>, %arg3: memref<1x128xf32, #tpu.memory_space<vmem>>, %arg4: memref<128x128xbf16, #tpu.memory_space<vmem>>, %arg5: memref<1x128xf32, #tpu.memory_space<vmem>>, %arg6: memref<128x128xbf16, #tpu.memory_space<vmem>>, %arg7: memref<1x128xf32, #tpu.memory_space<vmem>>, %arg8: memref<16x128xf32, #tpu.memory_space<vmem>>) attributes {dimension_semantics = [#tpu.dimension_semantics<parallel>], iteration_bounds = array<i64: 1>, scalar_prefetch = 0 : i64, scratch_operands = 0 : i64, tpu.core_type = #tpu.core_type<tc>, window_params = [{transform_indices = @transform_0, window_bounds = array<i64: 16, 32>}, {pipeline_mode = #tpu.pipeline_mode<synchronous>, transform_indices = @transform_1, window_bounds = array<i64: 32, 128>}, {pipeline_mode = #tpu.pipeline_mode<synchronous>, transform_indices = @transform_2, window_bounds = array<i64: 1, 128>}, {pipeline_mode = #tpu.pipeline_mode<synchronous>, transform_indices = @transform_3, window_bounds = array<i64: 128, 128>}, {pipeline_mode = #tpu.pipeline_mode<synchronous>, transform_indices = @transform_4, window_bounds = array<i64: 1, 128>}, {pipeline_mode = #tpu.pipeline_mode<synchronous>, transform_indices = @transform_5, window_bounds = array<i64: 128, 128>}, {pipeline_mode = #tpu.pipeline_mode<synchronous>, transform_indices = @transform_6, window_bounds = array<i64: 1, 128>}, {transform_indices = @transform_7, window_bounds = array<i64: 16, 128>}]} {
    %c0 = arith.constant 0 : index
    %c0_0 = arith.constant 0 : index
    %0 = vector.load %arg1[%c0, %c0_0] : memref<16x32xbf16, #tpu.memory_space<vmem>>, vector<16x32xbf16>
    %c0_1 = arith.constant 0 : index
    %c0_2 = arith.constant 0 : index
    %1 = vector.load %arg2[%c0_1, %c0_2] : memref<32x128xbf16, #tpu.memory_space<vmem>>, vector<32x128xbf16>
    %cst = arith.constant dense<0.000000e+00> : vector<16x128xf32>
    %2 = tpu.matmul %0, %1, %cst {dimension_numbers = #tpu.dot_dimension_numbers<[1], [0], [0], [1], [0, 0, 1, 1], [], []>} : vector<16x32xbf16>, vector<32x128xbf16>, vector<16x128xf32> -> vector<16x128xf32>
    %c0_3 = arith.constant 0 : index
    %c0_4 = arith.constant 0 : index
    %3 = vector.load %arg3[%c0_3, %c0_4] : memref<1x128xf32, #tpu.memory_space<vmem>>, vector<1x128xf32>
    %4 = vector.broadcast %3 : vector<1x128xf32> to vector<16x128xf32>
    %5 = arith.addf %2, %4 : vector<16x128xf32>
    %cst_5 = arith.constant 0.000000e+00 : f32
    %6 = vector.broadcast %cst_5 : f32 to vector<16x128xf32>
    %7 = arith.maximumf %5, %6 : vector<16x128xf32>
    %8 = arith.truncf %7 : vector<16x128xf32> to vector<16x128xbf16>
    %c0_6 = arith.constant 0 : index
    %c0_7 = arith.constant 0 : index
    %9 = vector.load %arg4[%c0_6, %c0_7] : memref<128x128xbf16, #tpu.memory_space<vmem>>, vector<128x128xbf16>
    %cst_8 = arith.constant dense<0.000000e+00> : vector<16x128xf32>
    %10 = tpu.matmul %8, %9, %cst_8 {dimension_numbers = #tpu.dot_dimension_numbers<[1], [0], [0], [1], [0, 0, 1, 1], [], []>} : vector<16x128xbf16>, vector<128x128xbf16>, vector<16x128xf32> -> vector<16x128xf32>
    %c0_9 = arith.constant 0 : index
    %c0_10 = arith.constant 0 : index
    %11 = vector.load %arg5[%c0_9, %c0_10] : memref<1x128xf32, #tpu.memory_space<vmem>>, vector<1x128xf32>
    %12 = vector.broadcast %11 : vector<1x128xf32> to vector<16x128xf32>
    %13 = arith.addf %10, %12 : vector<16x128xf32>
    %cst_11 = arith.constant 0.000000e+00 : f32
    %14 = vector.broadcast %cst_11 : f32 to vector<16x128xf32>
    %15 = arith.maximumf %13, %14 : vector<16x128xf32>
    %16 = arith.truncf %15 : vector<16x128xf32> to vector<16x128xbf16>
    %c0_12 = arith.constant 0 : index
    %c0_13 = arith.constant 0 : index
    %17 = vector.load %arg6[%c0_12, %c0_13] : memref<128x128xbf16, #tpu.memory_space<vmem>>, vector<128x128xbf16>
    %cst_14 = arith.constant dense<0.000000e+00> : vector<16x128xf32>
    %18 = tpu.matmul %16, %17, %cst_14 {dimension_numbers = #tpu.dot_dimension_numbers<[1], [0], [0], [1], [0, 0, 1, 1], [], []>} : vector<16x128xbf16>, vector<128x128xbf16>, vector<16x128xf32> -> vector<16x128xf32>
    %c0_15 = arith.constant 0 : index
    %c0_16 = arith.constant 0 : index
    %19 = vector.load %arg7[%c0_15, %c0_16] : memref<1x128xf32, #tpu.memory_space<vmem>>, vector<1x128xf32>
    %20 = vector.broadcast %19 : vector<1x128xf32> to vector<16x128xf32>
    %21 = arith.addf %18, %20 : vector<16x128xf32>
    %cst_17 = arith.constant 0.000000e+00 : f32
    %22 = vector.broadcast %cst_17 : f32 to vector<16x128xf32>
    %23 = arith.maximumf %21, %22 : vector<16x128xf32>
    %24 = math.absf %21 : vector<16x128xf32>
    %cst_18 = arith.constant 0.000000e+00 : f32
    %25 = vector.broadcast %cst_18 : f32 to vector<16x128xf32>
    %26 = arith.subf %25, %24 : vector<16x128xf32>
    %27 = math.exp %26 : vector<16x128xf32>
    %28 = math.log1p %27 : vector<16x128xf32>
    %29 = arith.addf %23, %28 : vector<16x128xf32>
    %c0_19 = arith.constant 0 : index
    %c0_20 = arith.constant 0 : index
    %30 = vector.load %arg8[%c0_19, %c0_20] : memref<16x128xf32, #tpu.memory_space<vmem>>, vector<16x128xf32>
    tpu.vector_store %arg8[%c0_19, %c0_20], %29 {strides = array<i32>} : memref<16x128xf32, #tpu.memory_space<vmem>>, vector<16x128xf32>,
    return
  }
  func.func @transform_0(%arg0: i32) -> (i32, i32) {
    %c0_i32 = arith.constant 0 : i32
    %c0_i32_0 = arith.constant 0 : i32
    return %arg0, %c0_i32 : i32, i32
  }
  func.func @transform_1(%arg0: i32) -> (i32, i32) {
    %c0_i32 = arith.constant 0 : i32
    %c0_i32_0 = arith.constant 0 : i32
    %c0_i32_1 = arith.constant 0 : i32
    return %c0_i32, %c0_i32_0 : i32, i32
  }
  func.func @transform_2(%arg0: i32) -> (i32, i32) {
    %c0_i32 = arith.constant 0 : i32
    %c0_i32_0 = arith.constant 0 : i32
    %c0_i32_1 = arith.constant 0 : i32
    return %c0_i32, %c0_i32_0 : i32, i32
  }
  func.func @transform_3(%arg0: i32) -> (i32, i32) {
    %c0_i32 = arith.constant 0 : i32
    %c0_i32_0 = arith.constant 0 : i32
    %c0_i32_1 = arith.constant 0 : i32
    return %c0_i32, %c0_i32_0 : i32, i32
  }
  func.func @transform_4(%arg0: i32) -> (i32, i32) {
    %c0_i32 = arith.constant 0 : i32
    %c0_i32_0 = arith.constant 0 : i32
    %c0_i32_1 = arith.constant 0 : i32
    return %c0_i32, %c0_i32_0 : i32, i32
  }
  func.func @transform_5(%arg0: i32) -> (i32, i32) {
    %c0_i32 = arith.constant 0 : i32
    %c0_i32_0 = arith.constant 0 : i32
    %c0_i32_1 = arith.constant 0 : i32
    return %c0_i32, %c0_i32_0 : i32, i32
  }
  func.func @transform_6(%arg0: i32) -> (i32, i32) {
    %c0_i32 = arith.constant 0 : i32
    %c0_i32_0 = arith.constant 0 : i32
    %c0_i32_1 = arith.constant 0 : i32
    return %c0_i32, %c0_i32_0 : i32, i32
  }
  func.func @transform_7(%arg0: i32) -> (i32, i32) {
    %c0_i32 = arith.constant 0 : i32
    %c0_i32_0 = arith.constant 0 : i32
    return %arg0, %c0_i32 : i32, i32
  }
}

module attributes {stable_mosaic.version = 11 : i64} {
  func.func @_fused_kernel(%arg0: i32, %arg1: memref<16x32xbf16, #tpu.memory_space<vmem>>, %arg2: memref<32x128xbf16, #tpu.memory_space<vmem>>, %arg3: memref<1x128xf32, #tpu.memory_space<vmem>>, %arg4: memref<128x128xbf16, #tpu.memory_space<vmem>>, %arg5: memref<1x128xf32, #tpu.memory_space<vmem>>, %arg6: memref<128x128xbf16, #tpu.memory_space<vmem>>, %arg7: memref<1x128xf32, #tpu.memory_space<vmem>>, %arg8: memref<16x128xf32, #tpu.memory_space<vmem>>) attributes {dimension_semantics = [#tpu.dimension_semantics<parallel>], iteration_bounds = array<i64: 1>, scalar_prefetch = 0 : i64, scratch_operands = 0 : i64, tpu.core_type = #tpu.core_type<tc>, window_params = [{transform_indices = @transform_0, window_bounds = array<i64: 16, 32>}, {pipeline_mode = #tpu.pipeline_mode<synchronous>, transform_indices = @transform_1, window_bounds = array<i64: 32, 128>}, {pipeline_mode = #tpu.pipeline_mode<synchronous>, transform_indices = @transform_2, window_bounds = array<i64: 1, 128>}, {pipeline_mode = #tpu.pipeline_mode<synchronous>, transform_indices = @transform_3, window_bounds = array<i64: 128, 128>}, {pipeline_mode = #tpu.pipeline_mode<synchronous>, transform_indices = @transform_4, window_bounds = array<i64: 1, 128>}, {pipeline_mode = #tpu.pipeline_mode<synchronous>, transform_indices = @transform_5, window_bounds = array<i64: 128, 128>}, {pipeline_mode = #tpu.pipeline_mode<synchronous>, transform_indices = @transform_6, window_bounds = array<i64: 1, 128>}, {transform_indices = @transform_7, window_bounds = array<i64: 16, 128>}]} {
    %c0 = arith.constant 0 : index
    %c0_0 = arith.constant 0 : index
    %0 = vector.load %arg1[%c0, %c0_0] : memref<16x32xbf16, #tpu.memory_space<vmem>>, vector<16x32xbf16>
    %c0_1 = arith.constant 0 : index
    %c0_2 = arith.constant 0 : index
    %1 = vector.load %arg2[%c0_1, %c0_2] : memref<32x128xbf16, #tpu.memory_space<vmem>>, vector<32x128xbf16>
    %cst = arith.constant dense<0.000000e+00> : vector<16x128xf32>
    %2 = tpu.matmul %0, %1, %cst {dimension_numbers = #tpu.dot_dimension_numbers<[1], [0], [0], [1], [0, 0, 1, 1], [], []>} : vector<16x32xbf16>, vector<32x128xbf16>, vector<16x128xf32> -> vector<16x128xf32>
    %c0_3 = arith.constant 0 : index
    %c0_4 = arith.constant 0 : index
    %3 = vector.load %arg3[%c0_3, %c0_4] : memref<1x128xf32, #tpu.memory_space<vmem>>, vector<1x128xf32>
    %4 = vector.broadcast %3 : vector<1x128xf32> to vector<16x128xf32>
    %5 = arith.addf %2, %4 : vector<16x128xf32>
    %cst_5 = arith.constant 0.000000e+00 : f32
    %6 = vector.broadcast %cst_5 : f32 to vector<16x128xf32>
    %7 = arith.maximumf %5, %6 : vector<16x128xf32>
    %8 = arith.truncf %7 : vector<16x128xf32> to vector<16x128xbf16>
    %c0_6 = arith.constant 0 : index
    %c0_7 = arith.constant 0 : index
    %9 = vector.load %arg4[%c0_6, %c0_7] : memref<128x128xbf16, #tpu.memory_space<vmem>>, vector<128x128xbf16>
    %cst_8 = arith.constant dense<0.000000e+00> : vector<16x128xf32>
    %10 = tpu.matmul %8, %9, %cst_8 {dimension_numbers = #tpu.dot_dimension_numbers<[1], [0], [0], [1], [0, 0, 1, 1], [], []>} : vector<16x128xbf16>, vector<128x128xbf16>, vector<16x128xf32> -> vector<16x128xf32>
    %c0_9 = arith.constant 0 : index
    %c0_10 = arith.constant 0 : index
    %11 = vector.load %arg5[%c0_9, %c0_10] : memref<1x128xf32, #tpu.memory_space<vmem>>, vector<1x128xf32>
    %12 = vector.broadcast %11 : vector<1x128xf32> to vector<16x128xf32>
    %13 = arith.addf %10, %12 : vector<16x128xf32>
    %cst_11 = arith.constant 0.000000e+00 : f32
    %14 = vector.broadcast %cst_11 : f32 to vector<16x128xf32>
    %15 = arith.maximumf %13, %14 : vector<16x128xf32>
    %16 = arith.truncf %15 : vector<16x128xf32> to vector<16x128xbf16>
    %c0_12 = arith.constant 0 : index
    %c0_13 = arith.constant 0 : index
    %17 = vector.load %arg6[%c0_12, %c0_13] : memref<128x128xbf16, #tpu.memory_space<vmem>>, vector<128x128xbf16>
    %cst_14 = arith.constant dense<0.000000e+00> : vector<16x128xf32>
    %18 = tpu.matmul %16, %17, %cst_14 {dimension_numbers = #tpu.dot_dimension_numbers<[1], [0], [0], [1], [0, 0, 1, 1], [], []>} : vector<16x128xbf16>, vector<128x128xbf16>, vector<16x128xf32> -> vector<16x128xf32>
    %c0_15 = arith.constant 0 : index
    %c0_16 = arith.constant 0 : index
    %19 = vector.load %arg7[%c0_15, %c0_16] : memref<1x128xf32, #tpu.memory_space<vmem>>, vector<1x128xf32>
    %20 = vector.broadcast %19 : vector<1x128xf32> to vector<16x128xf32>
    %21 = arith.addf %18, %20 : vector<16x128xf32>
    %cst_17 = arith.constant 0.000000e+00 : f32
    %22 = vector.broadcast %cst_17 : f32 to vector<16x128xf32>
    %23 = arith.maximumf %21, %22 : vector<16x128xf32>
    %24 = math.absf %21 : vector<16x128xf32>
    %cst_18 = arith.constant 0.000000e+00 : f32
    %25 = vector.broadcast %cst_18 : f32 to vector<16x128xf32>
    %26 = arith.subf %25, %24 : vector<16x128xf32>
    %27 = math.exp %26 : vector<16x128xf32>
    %28 = math.log1p %27 : vector<16x128xf32>
    %29 = arith.addf %23, %28 : vector<16x128xf32>
    %c0_19 = arith.constant 0 : index
    %c0_20 = arith.constant 0 : index
    %30 = vector.load %arg8[%c0_19, %c0_20] : memref<16x128xf32, #tpu.memory_space<vmem>>, vector<16x128xf32>
    tpu.vector_store %arg8[%c0_19, %c0_20], %29 {strides = array<i32>} : memref<16x128xf32, #tpu.memory_space<vmem>>, vector<16x128xf32>,
    return
  }
  func.func @transform_0(%arg0: i32) -> (i32, i32) {
    %c0_i32 = arith.constant 0 : i32
    %c0_i32_0 = arith.constant 0 : i32
    return %arg0, %c0_i32 : i32, i32
  }
  func.func @transform_1(%arg0: i32) -> (i32, i32) {
    %c0_i32 = arith.constant 0 : i32
    %c0_i32_0 = arith.constant 0 : i32
    %c0_i32_1 = arith.constant 0 : i32
    return %c0_i32, %c0_i32_0 : i32, i32
  }
  func.func @transform_2(%arg0: i32) -> (i32, i32) {
    %c0_i32 = arith.constant 0 : i32
    %c0_i32_0 = arith.constant 0 : i32
    %c0_i32_1 = arith.constant 0 : i32
    return %c0_i32, %c0_i32_0 : i32, i32
  }
  func.func @transform_3(%arg0: i32) -> (i32, i32) {
    %c0_i32 = arith.constant 0 : i32
    %c0_i32_0 = arith.constant 0 : i32
    %c0_i32_1 = arith.constant 0 : i32
    return %c0_i32, %c0_i32_0 : i32, i32
  }
  func.func @transform_4(%arg0: i32) -> (i32, i32) {
    %c0_i32 = arith.constant 0 : i32
    %c0_i32_0 = arith.constant 0 : i32
    %c0_i32_1 = arith.constant 0 : i32
    return %c0_i32, %c0_i32_0 : i32, i32
  }
  func.func @transform_5(%arg0: i32) -> (i32, i32) {
    %c0_i32 = arith.constant 0 : i32
    %c0_i32_0 = arith.constant 0 : i32
    %c0_i32_1 = arith.constant 0 : i32
    return %c0_i32, %c0_i32_0 : i32, i32
  }
  func.func @transform_6(%arg0: i32) -> (i32, i32) {
    %c0_i32 = arith.constant 0 : i32
    %c0_i32_0 = arith.constant 0 : i32
    %c0_i32_1 = arith.constant 0 : i32
    return %c0_i32, %c0_i32_0 : i32, i32
  }
  func.func @transform_7(%arg0: i32) -> (i32, i32) {
    %c0_i32 = arith.constant 0 : i32
    %c0_i32_0 = arith.constant 0 : i32
    return %arg0, %c0_i32 : i32, i32
  }
}

</mosaic_0001>

<llo_original>
// kernel: _forward_padded.1
$region0: #{_forward_padded.1}
  #allocation0 [shape = 'u32[]', space=smem, size = 0x4, offset = 0x4, fixed_abs, tag = 'smem constant byte address 0x4 - core index']
  #allocation1 [shape = 'u32[144,128]{1,0:T(1,128)}', space=vmem, size = 0x12000, scoped, tag = 'internal scratch']
  %s0 = inlined_call_operand.vmem [shape: bf16[16,32], index: 0, kind: input, shape index: {}]
  %s1 = inlined_call_operand.vmem [shape: bf16[32,128], index: 1, kind: input, shape index: {}]
  %s2 = inlined_call_operand.vmem [shape: f32[1,128], index: 2, kind: input, shape index: {}]
  %s3 = inlined_call_operand.hbm [shape: bf16[128,128], index: 3, kind: input, shape index: {}]
  %s4 = inlined_call_operand.vmem [shape: f32[1,128], index: 4, kind: input, shape index: {}]
  %s5 = inlined_call_operand.hbm [shape: bf16[128,128], index: 5, kind: input, shape index: {}]
  %s6 = inlined_call_operand.vmem [shape: f32[1,128], index: 6, kind: input, shape index: {}]
  %s7 = inlined_call_operand.hbm [shape: f32[16,128], index: 7, kind: output, shape index: {}]
  %s8 = sld [smem:[#allocation0]]
  $region46: #{_forward_padded.1} parent=0
    _
  %s10 = ssub.s32 1, %s8
  %s11 = scalar_select 0, %s10, %s8
  $region1: #{_forward_padded.1} parent=0
    #allocation2 [shape = 'u8[32768]{0}', space=vmem, size = 0x8000, scoped, tag = 'input window, operand 3, single buffered']
    #allocation3 [shape = 's32[1]{0}', space=sflag, size = 0x4, scoped, tag = 'scoped memory for _forward_padded.1']
    #allocation4 [shape = 's32[1]{0}', space=sflag, size = 0x4, scoped, tag = 'scoped memory for _forward_padded.1']
    #allocation5 [shape = 'u8[32768]{0}', space=vmem, size = 0x8000, scoped, tag = 'input window, operand 5, single buffered']
    #allocation6 [shape = 's32[1]{0}', space=sflag, size = 0x4, scoped, tag = 'scoped memory for _forward_padded.1']
    #allocation7 [shape = 'u8[8192]{0}', space=vmem, size = 0x2000, scoped, tag = 'output window, operand 0, single buffered']
    %12 = vsyncpa [#allocation3], 0
    %13 = vsyncpa [#allocation6], 0
    %14 = vsyncpa [#allocation4], 0
    // Predicated region
    $region2: #{_forward_padded.1} parent=1 // pred_check
      _
    $region3: #{_forward_padded.1} parent=1 // pred_check_branch
      %16 = sbr.rel (0) target = $region5
    $region4: #{_forward_padded.1} parent=1 // pred_region
      _
    $region5: #{_forward_padded.1} parent=1 // pred_fallthru
      _
    // Predicated region
    $region6: #{_forward_padded.1} parent=1 // pred_check
      _
    $region7: #{_forward_padded.1} parent=1 // pred_check_branch
      %18 = sbr.rel (0) target = $region9
    $region8: #{_forward_padded.1} parent=1 // pred_region
      _
    $region9: #{_forward_padded.1} parent=1 // pred_fallthru
      _
    // Predicated region
    $region10: #{_forward_padded.1} parent=1 // pred_check
      _
    $region11: #{_forward_padded.1} parent=1 // pred_check_branch
      %20 = sbr.rel (0) target = $region13
    $region12: #{_forward_padded.1} parent=1 // pred_region
      _
    $region13: #{_forward_padded.1} parent=1 // pred_fallthru
      _
    // Predicated region
    $region14: #{_forward_padded.1} parent=1 // pred_check
      _
    $region15: #{_forward_padded.1} parent=1 // pred_check_branch
      %22 = sbr.rel (0) target = $region17
    $region16: #{_forward_padded.1} parent=1 // pred_region
      %s24 = ssub.s32 1024, 1024
      %25 = vsyncadd [#allocation3], %s24
      %s26 = sshll.u32 [#allocation2], 4
      %s27 = int_to_ptr.vmem [resolvable:$true] %s26
      %32 = dma.hbm_to_vmem [thread:$0]  %s3, 1024, %s27, [#allocation3], 64, 64, 4
    $region17: #{_forward_padded.1} parent=1 // pred_fallthru
      _
    // Predicated region
    $region18: #{_forward_padded.1} parent=1 // pred_check
      _
    $region19: #{_forward_padded.1} parent=1 // pred_check_branch
      %34 = sbr.rel (0) target = $region21
    $region20: #{_forward_padded.1} parent=1 // pred_region
      _
    $region21: #{_forward_padded.1} parent=1 // pred_fallthru
      _
    // Predicated region
    $region22: #{_forward_padded.1} parent=1 // pred_check
      _
    $region23: #{_forward_padded.1} parent=1 // pred_check_branch
      %36 = sbr.rel (0) target = $region25
    $region24: #{_forward_padded.1} parent=1 // pred_region
      %s38 = ssub.s32 1024, 1024
      %39 = vsyncadd [#allocation6], %s38
      %s40 = sshll.u32 [#allocation5], 4
      %s41 = int_to_ptr.vmem [resolvable:$true] %s40
      %46 = dma.hbm_to_vmem [thread:$0]  %s5, 1024, %s41, [#allocation6], 64, 64, 4
    $region25: #{_forward_padded.1} parent=1 // pred_fallthru
      _
    // Predicated region
    $region26: #{_forward_padded.1} parent=1 // pred_check
      _
    $region27: #{_forward_padded.1} parent=1 // pred_check_branch
      %48 = sbr.rel (0) target = $region29
    $region28: #{_forward_padded.1} parent=1 // pred_region
      _
    $region29: #{_forward_padded.1} parent=1 // pred_fallthru
      _
    // Predicated region
    $region30: #{_forward_padded.1} parent=1 // pred_check
      _
    $region31: #{_forward_padded.1} parent=1 // pred_check_branch
      %50 = sbr.rel (0) target = $region33
    $region32: #{_forward_padded.1} parent=1 // pred_region
      %51 = dma.done [#allocation3], 1024
    $region33: #{_forward_padded.1} parent=1 // pred_fallthru
      _
    // Predicated region
    $region34: #{_forward_padded.1} parent=1 // pred_check
      _
    $region35: #{_forward_padded.1} parent=1 // pred_check_branch
      %53 = sbr.rel (0) target = $region37
    $region36: #{_forward_padded.1} parent=1 // pred_region
      %54 = dma.done [#allocation6], 1024
    $region37: #{_forward_padded.1} parent=1 // pred_fallthru
      _
    %v56 = vld [vmem:[%s0] sm:$0xf]
    %v57 = vld [vmem:[%s0 + $0x4] sm:$0xf]
    %v58 = vld [vmem:[%s1] sm:$0xf]
    %v59 = vld [vmem:[%s1 + $0x4] sm:$0xf]
    %v60 = vld [vmem:[%s1 + $0x8] sm:$0xf]
    %v61 = vld [vmem:[%s1 + $0xc] sm:$0xf]
    %v62 = vld [vmem:[%s2] sm:$0x1]
    %v64 = vlaneseq
    %v65 = vshrl.u32 %v64, 7
    %v66 = vsub.s32 0, %v65
    %v67 = vrot.slane %v62, %v66
    %v71 = vunpack.c.l.b16 %v56
    %v72 = vunpack.c.l.b16 %v57
    %v73 = vpack.c.b16 %v72, %v71
    %v78 = vunpack.c.l.b16 %v58
    %v79 = vunpack.c.l.b16 %v59
    %v80 = vunpack.c.l.b16 %v60
    %v81 = vunpack.c.l.b16 %v61
    %v82 = vpack.c.b16 %v79, %v78
    %v83 = vpack.c.b16 %v81, %v80
    %vm86 = vcmask 261120
    %v88 = vsel %vm86, %v73, 0
    %90 = vmatprep.subr.bf16.mxu0 0
    %91 = vmatpush1.bf16.msra.mxu0 %v82
    %92 = vmatprep.subr.bf16.mxu0 0
    %93 = vmatpush1.bf16.msra.mxu0 %v83
    %94 = vmatprep.subr.bf16.mxu0 0
    %95 = vmatpush1.bf16.msra.mxu0 0
    %96 = vmatprep.subr.bf16.mxu0 0
    %97 = vmatpush1.bf16.msra.mxu0 0
    %98 = vmatprep.subr.bf16.mxu0 0
    %99 = vmatpush1.bf16.msra.mxu0 0
    %100 = vmatprep.subr.bf16.mxu0 0
    %101 = vmatpush1.bf16.msra.mxu0 0
    %102 = vmatprep.subr.bf16.mxu0 0
    %103 = vmatpush1.bf16.msra.mxu0 0
    %104 = vmatprep.subr.bf16.mxu0 0
    %105 = vmatpush1.bf16.msra.mxu0 0
    %106 = vmatprep.subr.bf16.mxu0 0
    %107 = vmatpush1.bf16.msra.mxu0 0
    %108 = vmatprep.subr.bf16.mxu0 0
    %109 = vmatpush1.bf16.msra.mxu0 0
    %110 = vmatprep.subr.bf16.mxu0 0
    %111 = vmatpush1.bf16.msra.mxu0 0
    %112 = vmatprep.subr.bf16.mxu0 0
    %113 = vmatpush1.bf16.msra.mxu0 0
    %114 = vmatprep.subr.bf16.mxu0 0
    %115 = vmatpush1.bf16.msra.mxu0 0
    %116 = vmatprep.subr.bf16.mxu0 0
    %117 = vmatpush1.bf16.msra.mxu0 0
    %118 = vmatprep.subr.bf16.mxu0 0
    %119 = vmatpush1.bf16.msra.mxu0 0
    %120 = vmatprep.subr.bf16.mxu0 0
    %121 = vmatpush1.bf16.msra.mxu0 0
    %122 = vmatprep.mubr.bf16.mxu0 0
    %123 = vmatmul.mubr.bf16.gmra.mrb[0].mxu0 %v88
    %v124 = vpop.f32.mrb[0].mxu0
    %v125 = vadd.f32 %v67, %v124
    %v126 = vpop.f32.mrb[0].mxu0
    %v127 = vpop.f32.mrb[0].mxu0
    %v128 = vadd.f32 %v67, %v127
    %v129 = vpop.f32.mrb[0].mxu0
    %130 = vdwg.mxu0
    %v131 = vmax.f32 %v125, 0.0
    %v132 = vmax.f32 %v128, 0.0
    %v133 = vpack.c.bf16 %v132, %v131
    %v134 = vld [vmem:[#allocation2] sm:$0xf]
    %v135 = vld [vmem:[#allocation2 + $0x4] sm:$0xf]
    %v136 = vld [vmem:[#allocation2 + $0x8] sm:$0xf]
    %v137 = vld [vmem:[#allocation2 + $0xc] sm:$0xf]
    %v138 = vld [vmem:[#allocation2 + $0x10] sm:$0xf]
    %v139 = vld [vmem:[#allocation2 + $0x14] sm:$0xf]
    %v140 = vld [vmem:[#allocation2 + $0x18] sm:$0xf]
    %v141 = vld [vmem:[#allocation2 + $0x1c] sm:$0xf]
    %v142 = vld [vmem:[#allocation2 + $0x20] sm:$0xf]
    %v143 = vld [vmem:[#allocation2 + $0x24] sm:$0xf]
    %v144 = vld [vmem:[#allocation2 + $0x28] sm:$0xf]
    %v145 = vld [vmem:[#allocation2 + $0x2c] sm:$0xf]
    %v146 = vld [vmem:[#allocation2 + $0x30] sm:$0xf]
    %v147 = vld [vmem:[#allocation2 + $0x34] sm:$0xf]
    %v148 = vld [vmem:[#allocation2 + $0x38] sm:$0xf]
    %v149 = vld [vmem:[#allocation2 + $0x3c] sm:$0xf]
    %v150 = vld [vmem:[%s4] sm:$0x1]
    %v152 = vlaneseq
    %v153 = vshrl.u32 %v152, 7
    %v154 = vsub.s32 0, %v153
    %v155 = vrot.slane %v150, %v154
    %v173 = vunpack.c.l.b16 %v134
    %v174 = vunpack.c.l.b16 %v135
    %v175 = vunpack.c.l.b16 %v136
    %v176 = vunpack.c.l.b16 %v137
    %v177 = vunpack.c.l.b16 %v138
    %v178 = vunpack.c.l.b16 %v139
    %v179 = vunpack.c.l.b16 %v140
    %v180 = vunpack.c.l.b16 %v141
    %v181 = vunpack.c.l.b16 %v142
    %v182 = vunpack.c.l.b16 %v143
    %v183 = vunpack.c.l.b16 %v144
    %v184 = vunpack.c.l.b16 %v145
    %v185 = vunpack.c.l.b16 %v146
    %v186 = vunpack.c.l.b16 %v147
    %v187 = vunpack.c.l.b16 %v148
    %v188 = vunpack.c.l.b16 %v149
    %v189 = vpack.c.b16 %v174, %v173
    %v190 = vpack.c.b16 %v176, %v175
    %v191 = vpack.c.b16 %v178, %v177
    %v192 = vpack.c.b16 %v180, %v179
    %v193 = vpack.c.b16 %v182, %v181
    %v194 = vpack.c.b16 %v184, %v183
    %v195 = vpack.c.b16 %v186, %v185
    %v196 = vpack.c.b16 %v188, %v187
    %205 = vmatprep.subr.bf16.mxu0 0
    %206 = vmatpush1.bf16.msra.mxu0 %v189
    %207 = vmatprep.subr.bf16.mxu0 0
    %208 = vmatpush1.bf16.msra.mxu0 %v190
    %209 = vmatprep.subr.bf16.mxu0 0
    %210 = vmatpush1.bf16.msra.mxu0 %v191
    %211 = vmatprep.subr.bf16.mxu0 0
    %212 = vmatpush1.bf16.msra.mxu0 %v192
    %213 = vmatprep.subr.bf16.mxu0 0
    %214 = vmatpush1.bf16.msra.mxu0 %v193
    %215 = vmatprep.subr.bf16.mxu0 0
    %216 = vmatpush1.bf16.msra.mxu0 %v194
    %217 = vmatprep.subr.bf16.mxu0 0
    %218 = vmatpush1.bf16.msra.mxu0 %v195
    %219 = vmatprep.subr.bf16.mxu0 0
    %220 = vmatpush1.bf16.msra.mxu0 %v196
    %221 = vmatprep.subr.bf16.mxu0 0
    %222 = vmatpush1.bf16.msra.mxu0 0
    %223 = vmatprep.subr.bf16.mxu0 0
    %224 = vmatpush1.bf16.msra.mxu0 0
    %225 = vmatprep.subr.bf16.mxu0 0
    %226 = vmatpush1.bf16.msra.mxu0 0
    %227 = vmatprep.subr.bf16.mxu0 0
    %228 = vmatpush1.bf16.msra.mxu0 0
    %229 = vmatprep.subr.bf16.mxu0 0
    %230 = vmatpush1.bf16.msra.mxu0 0
    %231 = vmatprep.subr.bf16.mxu0 0
    %232 = vmatpush1.bf16.msra.mxu0 0
    %233 = vmatprep.subr.bf16.mxu0 0
    %234 = vmatpush1.bf16.msra.mxu0 0
    %235 = vmatprep.subr.bf16.mxu0 0
    %236 = vmatpush1.bf16.msra.mxu0 0
    %237 = vmatprep.mubr.bf16.mxu0 0
    %238 = vmatmul.mubr.bf16.gmra.mrb[0].mxu0 %v133
    %v239 = vpop.f32.mrb[0].mxu0
    %v240 = vadd.f32 %v155, %v239
    %v241 = vpop.f32.mrb[0].mxu0
    %v242 = vpop.f32.mrb[0].mxu0
    %v243 = vadd.f32 %v155, %v242
    %v244 = vpop.f32.mrb[0].mxu0
    %245 = vdwg.mxu0
    %v246 = vmax.f32 %v240, 0.0
    %v247 = vmax.f32 %v243, 0.0
    %v248 = vpack.c.bf16 %v247, %v246
    %v249 = vld [vmem:[#allocation5] sm:$0xf]
    %v250 = vld [vmem:[#allocation5 + $0x4] sm:$0xf]
    %v251 = vld [vmem:[#allocation5 + $0x8] sm:$0xf]
    %v252 = vld [vmem:[#allocation5 + $0xc] sm:$0xf]
    %v253 = vld [vmem:[#allocation5 + $0x10] sm:$0xf]
    %v254 = vld [vmem:[#allocation5 + $0x14] sm:$0xf]
    %v255 = vld [vmem:[#allocation5 + $0x18] sm:$0xf]
    %v256 = vld [vmem:[#allocation5 + $0x1c] sm:$0xf]
    %v257 = vld [vmem:[#allocation5 + $0x20] sm:$0xf]
    %v258 = vld [vmem:[#allocation5 + $0x24] sm:$0xf]
    %v259 = vld [vmem:[#allocation5 + $0x28] sm:$0xf]
    %v260 = vld [vmem:[#allocation5 + $0x2c] sm:$0xf]
    %v261 = vld [vmem:[#allocation5 + $0x30] sm:$0xf]
    %v262 = vld [vmem:[#allocation5 + $0x34] sm:$0xf]
    %v263 = vld [vmem:[#allocation5 + $0x38] sm:$0xf]
    %v264 = vld [vmem:[#allocation5 + $0x3c] sm:$0xf]
    %v265 = vld [vmem:[%s6] sm:$0x1]
    %v267 = vlaneseq
    %v268 = vshrl.u32 %v267, 7
    %v269 = vsub.s32 0, %v268
    %v270 = vrot.slane %v265, %v269
    %v288 = vunpack.c.l.b16 %v249
    %v289 = vunpack.c.l.b16 %v250
    %v290 = vunpack.c.l.b16 %v251
    %v291 = vunpack.c.l.b16 %v252
    %v292 = vunpack.c.l.b16 %v253
    %v293 = vunpack.c.l.b16 %v254
    %v294 = vunpack.c.l.b16 %v255
    %v295 = vunpack.c.l.b16 %v256
    %v296 = vunpack.c.l.b16 %v257
    %v297 = vunpack.c.l.b16 %v258
    %v298 = vunpack.c.l.b16 %v259
    %v299 = vunpack.c.l.b16 %v260
    %v300 = vunpack.c.l.b16 %v261
    %v301 = vunpack.c.l.b16 %v262
    %v302 = vunpack.c.l.b16 %v263
    %v303 = vunpack.c.l.b16 %v264
    %v304 = vpack.c.b16 %v289, %v288
    %v305 = vpack.c.b16 %v291, %v290
    %v306 = vpack.c.b16 %v293, %v292
    %v307 = vpack.c.b16 %v295, %v294
    %v308 = vpack.c.b16 %v297, %v296
    %v309 = vpack.c.b16 %v299, %v298
    %v310 = vpack.c.b16 %v301, %v300
    %v311 = vpack.c.b16 %v303, %v302
    %320 = vmatprep.subr.bf16.mxu0 0
    %321 = vmatpush1.bf16.msra.mxu0 %v304
    %322 = vmatprep.subr.bf16.mxu0 0
    %323 = vmatpush1.bf16.msra.mxu0 %v305
    %324 = vmatprep.subr.bf16.mxu0 0
    %325 = vmatpush1.bf16.msra.mxu0 %v306
    %326 = vmatprep.subr.bf16.mxu0 0
    %327 = vmatpush1.bf16.msra.mxu0 %v307
    %328 = vmatprep.subr.bf16.mxu0 0
    %329 = vmatpush1.bf16.msra.mxu0 %v308
    %330 = vmatprep.subr.bf16.mxu0 0
    %331 = vmatpush1.bf16.msra.mxu0 %v309
    %332 = vmatprep.subr.bf16.mxu0 0
    %333 = vmatpush1.bf16.msra.mxu0 %v310
    %334 = vmatprep.subr.bf16.mxu0 0
    %335 = vmatpush1.bf16.msra.mxu0 %v311
    %336 = vmatprep.subr.bf16.mxu0 0
    %337 = vmatpush1.bf16.msra.mxu0 0
    %338 = vmatprep.subr.bf16.mxu0 0
    %339 = vmatpush1.bf16.msra.mxu0 0
    %340 = vmatprep.subr.bf16.mxu0 0
    %341 = vmatpush1.bf16.msra.mxu0 0
    %342 = vmatprep.subr.bf16.mxu0 0
    %343 = vmatpush1.bf16.msra.mxu0 0
    %344 = vmatprep.subr.bf16.mxu0 0
    %345 = vmatpush1.bf16.msra.mxu0 0
    %346 = vmatprep.subr.bf16.mxu0 0
    %347 = vmatpush1.bf16.msra.mxu0 0
    %348 = vmatprep.subr.bf16.mxu0 0
    %349 = vmatpush1.bf16.msra.mxu0 0
    %350 = vmatprep.subr.bf16.mxu0 0
    %351 = vmatpush1.bf16.msra.mxu0 0
    %352 = vmatprep.mubr.bf16.mxu0 0
    %353 = vmatmul.mubr.bf16.gmra.mrb[0].mxu0 %v248
    %v354 = vpop.f32.mrb[0].mxu0
    %v355 = vadd.f32 %v270, %v354
    %v356 = vpop.f32.mrb[0].mxu0
    %v357 = vpop.f32.mrb[0].mxu0
    %v358 = vadd.f32 %v270, %v357
    %v359 = vpop.f32.mrb[0].mxu0
    %360 = vdwg.mxu0
    %v361 = vmax.f32 %v355, 0.0
    %v362 = vmax.f32 %v358, 0.0
    %v363 = vand.u32 2147483647, %v355
    %v364 = vand.u32 2147483647, %v358
    %v365 = vsub.f32 0.0, %v363
    %v366 = vsub.f32 0.0, %v364
    %v367 = vmul.f32 %v365, 1.442695
    %v368 = vpow.pop %v367
    %v369 = vmul.f32 %v366, 1.442695
    %v370 = vpow.pop %v369
    %v371 = vadd.f32 %v368, 1.0
    %v372 = vlog2.pop %v371
    %v373 = vmul.f32 %v372, 0.6931472
    %v374 = vmul.f32 -0.5, %v368
    %v375 = vadd.f32 %v374, 1.0
    %v376 = vmul.f32 %v375, %v368
    %v377 = vand.u32 2147483647, %v368
    %vm378 = vcmp.lt.f32.partialorder %v377, 0.0004427343
    %v379 = vsel %vm378, %v376, %v373
    %v380 = vadd.f32 %v370, 1.0
    %v381 = vlog2.pop %v380
    %v382 = vmul.f32 %v381, 0.6931472
    %v383 = vmul.f32 -0.5, %v370
    %v384 = vadd.f32 %v383, 1.0
    %v385 = vmul.f32 %v384, %v370
    %v386 = vand.u32 2147483647, %v370
    %vm387 = vcmp.lt.f32.partialorder %v386, 0.0004427343
    %v388 = vsel %vm387, %v385, %v382
    %v389 = vadd.f32 %v361, %v379
    %v390 = vadd.f32 %v362, %v388
    %391 = vst [vmem:[#allocation7] sm:$0xff] %v389
    %392 = vst [vmem:[#allocation7 + $0x8] sm:$0xff] %v390
    // Predicated region
    $region38: #{_forward_padded.1} parent=1 // pred_check
      _
    $region39: #{_forward_padded.1} parent=1 // pred_check_branch
      %394 = sbr.rel (0) target = $region41
    $region40: #{_forward_padded.1} parent=1 // pred_region
      %s396 = ssub.s32 256, 256
      %397 = vsyncadd [#allocation4], %s396
      %s398 = sshll.u32 [#allocation7], 4
      %s399 = int_to_ptr.vmem [resolvable:$true] %s398
      %404 = dma.vmem_to_hbm [thread:$0]  %s399, 256, %s7, [#allocation4], 128, 128, 8
    $region41: #{_forward_padded.1} parent=1 // pred_fallthru
      _
    // Predicated region
    $region42: #{_forward_padded.1} parent=1 // pred_check
      _
    $region43: #{_forward_padded.1} parent=1 // pred_check_branch
      %406 = sbr.rel (0) target = $region45
    $region44: #{_forward_padded.1} parent=1 // pred_region
      %407 = dma.done [#allocation4], 256
    $region45: #{_forward_padded.1} parent=1 // pred_fallthru
      _
    %408 = vsyncpa [#allocation3], 1
    %409 = vsyncpa [#allocation6], 1
    %410 = vsyncpa [#allocation4], 1

// kernel: _forward_padded.1
$region0: #{_forward_padded.1}
  #allocation0 [shape = 'u32[]', space=smem, size = 0x4, offset = 0x4, fixed_abs, tag = 'smem constant byte address 0x4 - core index']
  #allocation1 [shape = 'u32[144,128]{1,0:T(1,128)}', space=vmem, size = 0x12000, scoped, tag = 'internal scratch']
  %s0 = inlined_call_operand.vmem [shape: bf16[16,32], index: 0, kind: input, shape index: {}]
  %s1 = inlined_call_operand.vmem [shape: bf16[32,128], index: 1, kind: input, shape index: {}]
  %s2 = inlined_call_operand.vmem [shape: f32[1,128], index: 2, kind: input, shape index: {}]
  %s3 = inlined_call_operand.hbm [shape: bf16[128,128], index: 3, kind: input, shape index: {}]
  %s4 = inlined_call_operand.vmem [shape: f32[1,128], index: 4, kind: input, shape index: {}]
  %s5 = inlined_call_operand.hbm [shape: bf16[128,128], index: 5, kind: input, shape index: {}]
  %s6 = inlined_call_operand.vmem [shape: f32[1,128], index: 6, kind: input, shape index: {}]
  %s7 = inlined_call_operand.hbm [shape: f32[16,128], index: 7, kind: output, shape index: {}]
  %s8 = sld [smem:[#allocation0]]
  $region46: #{_forward_padded.1} parent=0
    _
  %s10 = ssub.s32 1, %s8
  %s11 = scalar_select 0, %s10, %s8
  $region1: #{_forward_padded.1} parent=0
    #allocation2 [shape = 'u8[32768]{0}', space=vmem, size = 0x8000, scoped, tag = 'input window, operand 3, single buffered']
    #allocation3 [shape = 's32[1]{0}', space=sflag, size = 0x4, scoped, tag = 'scoped memory for _forward_padded.1']
    #allocation4 [shape = 's32[1]{0}', space=sflag, size = 0x4, scoped, tag = 'scoped memory for _forward_padded.1']
    #allocation5 [shape = 'u8[32768]{0}', space=vmem, size = 0x8000, scoped, tag = 'input window, operand 5, single buffered']
    #allocation6 [shape = 's32[1]{0}', space=sflag, size = 0x4, scoped, tag = 'scoped memory for _forward_padded.1']
    #allocation7 [shape = 'u8[8192]{0}', space=vmem, size = 0x2000, scoped, tag = 'output window, operand 0, single buffered']
    %12 = vsyncpa [#allocation3], 0
    %13 = vsyncpa [#allocation6], 0
    %14 = vsyncpa [#allocation4], 0
    // Predicated region
    $region2: #{_forward_padded.1} parent=1 // pred_check
      _
    $region3: #{_forward_padded.1} parent=1 // pred_check_branch
      %16 = sbr.rel (0) target = $region5
    $region4: #{_forward_padded.1} parent=1 // pred_region
      _
    $region5: #{_forward_padded.1} parent=1 // pred_fallthru
      _
    // Predicated region
    $region6: #{_forward_padded.1} parent=1 // pred_check
      _
    $region7: #{_forward_padded.1} parent=1 // pred_check_branch
      %18 = sbr.rel (0) target = $region9
    $region8: #{_forward_padded.1} parent=1 // pred_region
      _
    $region9: #{_forward_padded.1} parent=1 // pred_fallthru
      _
    // Predicated region
    $region10: #{_forward_padded.1} parent=1 // pred_check
      _
    $region11: #{_forward_padded.1} parent=1 // pred_check_branch
      %20 = sbr.rel (0) target = $region13
    $region12: #{_forward_padded.1} parent=1 // pred_region
      _
    $region13: #{_forward_padded.1} parent=1 // pred_fallthru
      _
    // Predicated region
    $region14: #{_forward_padded.1} parent=1 // pred_check
      _
    $region15: #{_forward_padded.1} parent=1 // pred_check_branch
      %22 = sbr.rel (0) target = $region17
    $region16: #{_forward_padded.1} parent=1 // pred_region
      %s24 = ssub.s32 1024, 1024
      %25 = vsyncadd [#allocation3], %s24
      %s26 = sshll.u32 [#allocation2], 4
      %s27 = int_to_ptr.vmem [resolvable:$true] %s26
      %32 = dma.hbm_to_vmem [thread:$0]  %s3, 1024, %s27, [#allocation3], 64, 64, 4
    $region17: #{_forward_padded.1} parent=1 // pred_fallthru
      _
    // Predicated region
    $region18: #{_forward_padded.1} parent=1 // pred_check
      _
    $region19: #{_forward_padded.1} parent=1 // pred_check_branch
      %34 = sbr.rel (0) target = $region21
    $region20: #{_forward_padded.1} parent=1 // pred_region
      _
    $region21: #{_forward_padded.1} parent=1 // pred_fallthru
      _
    // Predicated region
    $region22: #{_forward_padded.1} parent=1 // pred_check
      _
    $region23: #{_forward_padded.1} parent=1 // pred_check_branch
      %36 = sbr.rel (0) target = $region25
    $region24: #{_forward_padded.1} parent=1 // pred_region
      %s38 = ssub.s32 1024, 1024
      %39 = vsyncadd [#allocation6], %s38
      %s40 = sshll.u32 [#allocation5], 4
      %s41 = int_to_ptr.vmem [resolvable:$true] %s40
      %46 = dma.hbm_to_vmem [thread:$0]  %s5, 1024, %s41, [#allocation6], 64, 64, 4
    $region25: #{_forward_padded.1} parent=1 // pred_fallthru
      _
    // Predicated region
    $region26: #{_forward_padded.1} parent=1 // pred_check
      _
    $region27: #{_forward_padded.1} parent=1 // pred_check_branch
      %48 = sbr.rel (0) target = $region29
    $region28: #{_forward_padded.1} parent=1 // pred_region
      _
    $region29: #{_forward_padded.1} parent=1 // pred_fallthru
      _
    // Predicated region
    $region30: #{_forward_padded.1} parent=1 // pred_check
      _
    $region31: #{_forward_padded.1} parent=1 // pred_check_branch
      %50 = sbr.rel (0) target = $region33
    $region32: #{_forward_padded.1} parent=1 // pred_region
      %51 = dma.done [#allocation3], 1024
    $region33: #{_forward_padded.1} parent=1 // pred_fallthru
      _
    // Predicated region
    $region34: #{_forward_padded.1} parent=1 // pred_check
      _
    $region35: #{_forward_padded.1} parent=1 // pred_check_branch
      %53 = sbr.rel (0) target = $region37
    $region36: #{_forward_padded.1} parent=1 // pred_region
      %54 = dma.done [#allocation6], 1024
    $region37: #{_forward_padded.1} parent=1 // pred_fallthru
      _
    %v56 = vld [vmem:[%s0] sm:$0xf]
    %v57 = vld [vmem:[%s0 + $0x4] sm:$0xf]
    %v58 = vld [vmem:[%s1] sm:$0xf]
    %v59 = vld [vmem:[%s1 + $0x4] sm:$0xf]
    %v60 = vld [vmem:[%s1 + $0x8] sm:$0xf]
    %v61 = vld [vmem:[%s1 + $0xc] sm:$0xf]
    %v62 = vld [vmem:[%s2] sm:$0x1]
    %v64 = vlaneseq
    %v65 = vshrl.u32 %v64, 7
    %v66 = vsub.s32 0, %v65
    %v67 = vrot.slane %v62, %v66
    %v71 = vunpack.c.l.b16 %v56
    %v72 = vunpack.c.l.b16 %v57
    %v73 = vpack.c.b16 %v72, %v71
    %v78 = vunpack.c.l.b16 %v58
    %v79 = vunpack.c.l.b16 %v59
    %v80 = vunpack.c.l.b16 %v60
    %v81 = vunpack.c.l.b16 %v61
    %v82 = vpack.c.b16 %v79, %v78
    %v83 = vpack.c.b16 %v81, %v80
    %vm86 = vcmask 261120
    %v88 = vsel %vm86, %v73, 0
    %90 = vmatprep.subr.bf16.mxu0 0
    %91 = vmatpush1.bf16.msra.mxu0 %v82
    %92 = vmatprep.subr.bf16.mxu0 0
    %93 = vmatpush1.bf16.msra.mxu0 %v83
    %94 = vmatprep.subr.bf16.mxu0 0
    %95 = vmatpush1.bf16.msra.mxu0 0
    %96 = vmatprep.subr.bf16.mxu0 0
    %97 = vmatpush1.bf16.msra.mxu0 0
    %98 = vmatprep.subr.bf16.mxu0 0
    %99 = vmatpush1.bf16.msra.mxu0 0
    %100 = vmatprep.subr.bf16.mxu0 0
    %101 = vmatpush1.bf16.msra.mxu0 0
    %102 = vmatprep.subr.bf16.mxu0 0
    %103 = vmatpush1.bf16.msra.mxu0 0
    %104 = vmatprep.subr.bf16.mxu0 0
    %105 = vmatpush1.bf16.msra.mxu0 0
    %106 = vmatprep.subr.bf16.mxu0 0
    %107 = vmatpush1.bf16.msra.mxu0 0
    %108 = vmatprep.subr.bf16.mxu0 0
    %109 = vmatpush1.bf16.msra.mxu0 0
    %110 = vmatprep.subr.bf16.mxu0 0
    %111 = vmatpush1.bf16.msra.mxu0 0
    %112 = vmatprep.subr.bf16.mxu0 0
    %113 = vmatpush1.bf16.msra.mxu0 0
    %114 = vmatprep.subr.bf16.mxu0 0
    %115 = vmatpush1.bf16.msra.mxu0 0
    %116 = vmatprep.subr.bf16.mxu0 0
    %117 = vmatpush1.bf16.msra.mxu0 0
    %118 = vmatprep.subr.bf16.mxu0 0
    %119 = vmatpush1.bf16.msra.mxu0 0
    %120 = vmatprep.subr.bf16.mxu0 0
    %121 = vmatpush1.bf16.msra.mxu0 0
    %122 = vmatprep.mubr.bf16.mxu0 0
    %123 = vmatmul.mubr.bf16.gmra.mrb[0].mxu0 %v88
    %v124 = vpop.f32.mrb[0].mxu0
    %v125 = vadd.f32 %v67, %v124
    %v126 = vpop.f32.mrb[0].mxu0
    %v127 = vpop.f32.mrb[0].mxu0
    %v128 = vadd.f32 %v67, %v127
    %v129 = vpop.f32.mrb[0].mxu0
    %130 = vdwg.mxu0
    %v131 = vmax.f32 %v125, 0.0
    %v132 = vmax.f32 %v128, 0.0
    %v133 = vpack.c.bf16 %v132, %v131
    %v134 = vld [vmem:[#allocation2] sm:$0xf]
    %v135 = vld [vmem:[#allocation2 + $0x4] sm:$0xf]
    %v136 = vld [vmem:[#allocation2 + $0x8] sm:$0xf]
    %v137 = vld [vmem:[#allocation2 + $0xc] sm:$0xf]
    %v138 = vld [vmem:[#allocation2 + $0x10] sm:$0xf]
    %v139 = vld [vmem:[#allocation2 + $0x14] sm:$0xf]
    %v140 = vld [vmem:[#allocation2 + $0x18] sm:$0xf]
    %v141 = vld [vmem:[#allocation2 + $0x1c] sm:$0xf]
    %v142 = vld [vmem:[#allocation2 + $0x20] sm:$0xf]
    %v143 = vld [vmem:[#allocation2 + $0x24] sm:$0xf]
    %v144 = vld [vmem:[#allocation2 + $0x28] sm:$0xf]
    %v145 = vld [vmem:[#allocation2 + $0x2c] sm:$0xf]
    %v146 = vld [vmem:[#allocation2 + $0x30] sm:$0xf]
    %v147 = vld [vmem:[#allocation2 + $0x34] sm:$0xf]
    %v148 = vld [vmem:[#allocation2 + $0x38] sm:$0xf]
    %v149 = vld [vmem:[#allocation2 + $0x3c] sm:$0xf]
    %v150 = vld [vmem:[%s4] sm:$0x1]
    %v152 = vlaneseq
    %v153 = vshrl.u32 %v152, 7
    %v154 = vsub.s32 0, %v153
    %v155 = vrot.slane %v150, %v154
    %v173 = vunpack.c.l.b16 %v134
    %v174 = vunpack.c.l.b16 %v135
    %v175 = vunpack.c.l.b16 %v136
    %v176 = vunpack.c.l.b16 %v137
    %v177 = vunpack.c.l.b16 %v138
    %v178 = vunpack.c.l.b16 %v139
    %v179 = vunpack.c.l.b16 %v140
    %v180 = vunpack.c.l.b16 %v141
    %v181 = vunpack.c.l.b16 %v142
    %v182 = vunpack.c.l.b16 %v143
    %v183 = vunpack.c.l.b16 %v144
    %v184 = vunpack.c.l.b16 %v145
    %v185 = vunpack.c.l.b16 %v146
    %v186 = vunpack.c.l.b16 %v147
    %v187 = vunpack.c.l.b16 %v148
    %v188 = vunpack.c.l.b16 %v149
    %v189 = vpack.c.b16 %v174, %v173
    %v190 = vpack.c.b16 %v176, %v175
    %v191 = vpack.c.b16 %v178, %v177
    %v192 = vpack.c.b16 %v180, %v179
    %v193 = vpack.c.b16 %v182, %v181
    %v194 = vpack.c.b16 %v184, %v183
    %v195 = vpack.c.b16 %v186, %v185
    %v196 = vpack.c.b16 %v188, %v187
    %205 = vmatprep.subr.bf16.mxu0 0
    %206 = vmatpush1.bf16.msra.mxu0 %v189
    %207 = vmatprep.subr.bf16.mxu0 0
    %208 = vmatpush1.bf16.msra.mxu0 %v190
    %209 = vmatprep.subr.bf16.mxu0 0
    %210 = vmatpush1.bf16.msra.mxu0 %v191
    %211 = vmatprep.subr.bf16.mxu0 0
    %212 = vmatpush1.bf16.msra.mxu0 %v192
    %213 = vmatprep.subr.bf16.mxu0 0
    %214 = vmatpush1.bf16.msra.mxu0 %v193
    %215 = vmatprep.subr.bf16.mxu0 0
    %216 = vmatpush1.bf16.msra.mxu0 %v194
    %217 = vmatprep.subr.bf16.mxu0 0
    %218 = vmatpush1.bf16.msra.mxu0 %v195
    %219 = vmatprep.subr.bf16.mxu0 0
    %220 = vmatpush1.bf16.msra.mxu0 %v196
    %221 = vmatprep.subr.bf16.mxu0 0
    %222 = vmatpush1.bf16.msra.mxu0 0
    %223 = vmatprep.subr.bf16.mxu0 0
    %224 = vmatpush1.bf16.msra.mxu0 0
    %225 = vmatprep.subr.bf16.mxu0 0
    %226 = vmatpush1.bf16.msra.mxu0 0
    %227 = vmatprep.subr.bf16.mxu0 0
    %228 = vmatpush1.bf16.msra.mxu0 0
    %229 = vmatprep.subr.bf16.mxu0 0
    %230 = vmatpush1.bf16.msra.mxu0 0
    %231 = vmatprep.subr.bf16.mxu0 0
    %232 = vmatpush1.bf16.msra.mxu0 0
    %233 = vmatprep.subr.bf16.mxu0 0
    %234 = vmatpush1.bf16.msra.mxu0 0
    %235 = vmatprep.subr.bf16.mxu0 0
    %236 = vmatpush1.bf16.msra.mxu0 0
    %237 = vmatprep.mubr.bf16.mxu0 0
    %238 = vmatmul.mubr.bf16.gmra.mrb[0].mxu0 %v133
    %v239 = vpop.f32.mrb[0].mxu0
    %v240 = vadd.f32 %v155, %v239
    %v241 = vpop.f32.mrb[0].mxu0
    %v242 = vpop.f32.mrb[0].mxu0
    %v243 = vadd.f32 %v155, %v242
    %v244 = vpop.f32.mrb[0].mxu0
    %245 = vdwg.mxu0
    %v246 = vmax.f32 %v240, 0.0
    %v247 = vmax.f32 %v243, 0.0
    %v248 = vpack.c.bf16 %v247, %v246
    %v249 = vld [vmem:[#allocation5] sm:$0xf]
    %v250 = vld [vmem:[#allocation5 + $0x4] sm:$0xf]
    %v251 = vld [vmem:[#allocation5 + $0x8] sm:$0xf]
    %v252 = vld [vmem:[#allocation5 + $0xc] sm:$0xf]
    %v253 = vld [vmem:[#allocation5 + $0x10] sm:$0xf]
    %v254 = vld [vmem:[#allocation5 + $0x14] sm:$0xf]
    %v255 = vld [vmem:[#allocation5 + $0x18] sm:$0xf]
    %v256 = vld [vmem:[#allocation5 + $0x1c] sm:$0xf]
    %v257 = vld [vmem:[#allocation5 + $0x20] sm:$0xf]
    %v258 = vld [vmem:[#allocation5 + $0x24] sm:$0xf]
    %v259 = vld [vmem:[#allocation5 + $0x28] sm:$0xf]
    %v260 = vld [vmem:[#allocation5 + $0x2c] sm:$0xf]
    %v261 = vld [vmem:[#allocation5 + $0x30] sm:$0xf]
    %v262 = vld [vmem:[#allocation5 + $0x34] sm:$0xf]
    %v263 = vld [vmem:[#allocation5 + $0x38] sm:$0xf]
    %v264 = vld [vmem:[#allocation5 + $0x3c] sm:$0xf]
    %v265 = vld [vmem:[%s6] sm:$0x1]
    %v267 = vlaneseq
    %v268 = vshrl.u32 %v267, 7
    %v269 = vsub.s32 0, %v268
    %v270 = vrot.slane %v265, %v269
    %v288 = vunpack.c.l.b16 %v249
    %v289 = vunpack.c.l.b16 %v250
    %v290 = vunpack.c.l.b16 %v251
    %v291 = vunpack.c.l.b16 %v252
    %v292 = vunpack.c.l.b16 %v253
    %v293 = vunpack.c.l.b16 %v254
    %v294 = vunpack.c.l.b16 %v255
    %v295 = vunpack.c.l.b16 %v256
    %v296 = vunpack.c.l.b16 %v257
    %v297 = vunpack.c.l.b16 %v258
    %v298 = vunpack.c.l.b16 %v259
    %v299 = vunpack.c.l.b16 %v260
    %v300 = vunpack.c.l.b16 %v261
    %v301 = vunpack.c.l.b16 %v262
    %v302 = vunpack.c.l.b16 %v263
    %v303 = vunpack.c.l.b16 %v264
    %v304 = vpack.c.b16 %v289, %v288
    %v305 = vpack.c.b16 %v291, %v290
    %v306 = vpack.c.b16 %v293, %v292
    %v307 = vpack.c.b16 %v295, %v294
    %v308 = vpack.c.b16 %v297, %v296
    %v309 = vpack.c.b16 %v299, %v298
    %v310 = vpack.c.b16 %v301, %v300
    %v311 = vpack.c.b16 %v303, %v302
    %320 = vmatprep.subr.bf16.mxu0 0
    %321 = vmatpush1.bf16.msra.mxu0 %v304
    %322 = vmatprep.subr.bf16.mxu0 0
    %323 = vmatpush1.bf16.msra.mxu0 %v305
    %324 = vmatprep.subr.bf16.mxu0 0
    %325 = vmatpush1.bf16.msra.mxu0 %v306
    %326 = vmatprep.subr.bf16.mxu0 0
    %327 = vmatpush1.bf16.msra.mxu0 %v307
    %328 = vmatprep.subr.bf16.mxu0 0
    %329 = vmatpush1.bf16.msra.mxu0 %v308
    %330 = vmatprep.subr.bf16.mxu0 0
    %331 = vmatpush1.bf16.msra.mxu0 %v309
    %332 = vmatprep.subr.bf16.mxu0 0
    %333 = vmatpush1.bf16.msra.mxu0 %v310
    %334 = vmatprep.subr.bf16.mxu0 0
    %335 = vmatpush1.bf16.msra.mxu0 %v311
    %336 = vmatprep.subr.bf16.mxu0 0
    %337 = vmatpush1.bf16.msra.mxu0 0
    %338 = vmatprep.subr.bf16.mxu0 0
    %339 = vmatpush1.bf16.msra.mxu0 0
    %340 = vmatprep.subr.bf16.mxu0 0
    %341 = vmatpush1.bf16.msra.mxu0 0
    %342 = vmatprep.subr.bf16.mxu0 0
    %343 = vmatpush1.bf16.msra.mxu0 0
    %344 = vmatprep.subr.bf16.mxu0 0
    %345 = vmatpush1.bf16.msra.mxu0 0
    %346 = vmatprep.subr.bf16.mxu0 0
    %347 = vmatpush1.bf16.msra.mxu0 0
    %348 = vmatprep.subr.bf16.mxu0 0
    %349 = vmatpush1.bf16.msra.mxu0 0
    %350 = vmatprep.subr.bf16.mxu0 0
    %351 = vmatpush1.bf16.msra.mxu0 0
    %352 = vmatprep.mubr.bf16.mxu0 0
    %353 = vmatmul.mubr.bf16.gmra.mrb[0].mxu0 %v248
    %v354 = vpop.f32.mrb[0].mxu0
    %v355 = vadd.f32 %v270, %v354
    %v356 = vpop.f32.mrb[0].mxu0
    %v357 = vpop.f32.mrb[0].mxu0
    %v358 = vadd.f32 %v270, %v357
    %v359 = vpop.f32.mrb[0].mxu0
    %360 = vdwg.mxu0
    %v361 = vmax.f32 %v355, 0.0
    %v362 = vmax.f32 %v358, 0.0
    %v363 = vand.u32 2147483647, %v355
    %v364 = vand.u32 2147483647, %v358
    %v365 = vsub.f32 0.0, %v363
    %v366 = vsub.f32 0.0, %v364
    %v367 = vmul.f32 %v365, 1.442695
    %v368 = vpow.pop %v367
    %v369 = vmul.f32 %v366, 1.442695
    %v370 = vpow.pop %v369
    %v371 = vadd.f32 %v368, 1.0
    %v372 = vlog2.pop %v371
    %v373 = vmul.f32 %v372, 0.6931472
    %v374 = vmul.f32 -0.5, %v368
    %v375 = vadd.f32 %v374, 1.0
    %v376 = vmul.f32 %v375, %v368
    %v377 = vand.u32 2147483647, %v368
    %vm378 = vcmp.lt.f32.partialorder %v377, 0.0004427343
    %v379 = vsel %vm378, %v376, %v373
    %v380 = vadd.f32 %v370, 1.0
    %v381 = vlog2.pop %v380
    %v382 = vmul.f32 %v381, 0.6931472
    %v383 = vmul.f32 -0.5, %v370
    %v384 = vadd.f32 %v383, 1.0
    %v385 = vmul.f32 %v384, %v370
    %v386 = vand.u32 2147483647, %v370
    %vm387 = vcmp.lt.f32.partialorder %v386, 0.0004427343
    %v388 = vsel %vm387, %v385, %v382
    %v389 = vadd.f32 %v361, %v379
    %v390 = vadd.f32 %v362, %v388
    %391 = vst [vmem:[#allocation7] sm:$0xff] %v389
    %392 = vst [vmem:[#allocation7 + $0x8] sm:$0xff] %v390
    // Predicated region
    $region38: #{_forward_padded.1} parent=1 // pred_check
      _
    $region39: #{_forward_padded.1} parent=1 // pred_check_branch
      %394 = sbr.rel (0) target = $region41
    $region40: #{_forward_padded.1} parent=1 // pred_region
      %s396 = ssub.s32 256, 256
      %397 = vsyncadd [#allocation4], %s396
      %s398 = sshll.u32 [#allocation7], 4
      %s399 = int_to_ptr.vmem [resolvable:$true] %s398
      %404 = dma.vmem_to_hbm [thread:$0]  %s399, 256, %s7, [#allocation4], 128, 128, 8
    $region41: #{_forward_padded.1} parent=1 // pred_fallthru
      _
    // Predicated region
    $region42: #{_forward_padded.1} parent=1 // pred_check
      _
    $region43: #{_forward_padded.1} parent=1 // pred_check_branch
      %406 = sbr.rel (0) target = $region45
    $region44: #{_forward_padded.1} parent=1 // pred_region
      %407 = dma.done [#allocation4], 256
    $region45: #{_forward_padded.1} parent=1 // pred_fallthru
      _
    %408 = vsyncpa [#allocation3], 1
    %409 = vsyncpa [#allocation6], 1
    %410 = vsyncpa [#allocation4], 1

</llo_original>
